<compile_context>
chip_gen: v5e
topology: v5e:2x2
jax: 0.10.0
libtpu: 0.0.40
codegen_flags: <defaults>
</compile_context>

<pallas_src>
import functools

import jax
import jax.numpy as jnp
from jax.experimental import pallas as pl
from jax.experimental.pallas import tpu as pltpu

EPS = 1e-5
LEAKY_SLOPE = 0.2


def _vmem_limit_bytes():
    # Raise the scoped-VMEM ceiling above the 16/32 MiB defaults but stay well
    # under physical VMEM on every generation (v7x: 64 MiB per TensorCore).
    try:
        cap = pltpu.get_tpu_info().vmem_capacity_bytes
    except Exception:
        cap = 64 * 1024 * 1024
    return int(min(cap * 3 // 4, 96 * 1024 * 1024))


_VMEM_LIMIT = _vmem_limit_bytes()


def _convblock_kernel(z_ref, w_ref, b_ref, s_ref, o_ref,
                      y_ref, mean_ref, acc_ref, *, ho, wo, wp):
    # z_ref:    (1, TK, Hp*Wp)   space-to-depth repack of the padded raw input
    # w_ref:    (4, C_out, TK)   conv weights split by the 2x2 stride phase
    # b/s/o:    (C_out, 1)       conv bias, instance-norm scale / offset
    # y_ref:    (1, C_out, Ho*Wo) normalized output, HW on the lane axis
    # mean_ref: (1, C_out, 1)    per-channel mean of the conv output (pre-norm)
    # acc_ref:  (C_out, L)       VMEM accumulator in the padded spatial domain
    kk = pl.program_id(1)          # K-tile index (reduction axis)
    nk = pl.num_programs(1)
    hw = ho * wo
    L = acc_ref.shape[1]           # = ho*wp - 1 (padded-domain output width)

    zb = z_ref[0]                                          # (TK, Hp*Wp)
    # LeakyReLU commutes with zero padding / repacking (leaky_relu(0) == 0).
    zb = jnp.where(zb >= 0, zb, LEAKY_SLOPE * zb)

    # Conv(k=4, s=2, p=1) == sum over the four 2x2 output-shifts (dh, dw) of a
    # plain matmul against a lane-shifted view of the s2d input.
    part = None
    for d, off in enumerate((0, 1, wp, wp + 1)):           # off = dh*wp + dw
        zv = zb[:, off:off + L]                            # (TK, L) static slice
        p = jnp.dot(w_ref[d], zv, preferred_element_type=jnp.float32)
        part = p if part is None else part + p             # (C_out, L)

    @pl.when(kk == 0)
    def _():
        acc_ref[...] = part

    @pl.when(kk > 0)
    def _():
        acc_ref[...] += part

    @pl.when(kk == nk - 1)
    def _():
        # Compact padded-domain rows (stride wp) into dense rows (stride wo).
        for h in range(ho):
            y_ref[0, :, h * wo:(h + 1) * wo] = acc_ref[:, h * wp:h * wp + wo]

        conv = y_ref[0]                                    # (C_out, HW), no bias
        inv_hw = 1.0 / hw
        mean = jnp.sum(conv, axis=-1, keepdims=True) * inv_hw      # (C_out, 1)
        cen = conv - mean
        var = jnp.sum(cen * cen, axis=-1, keepdims=True) * inv_hw  # population var
        gain = jax.lax.rsqrt(var + EPS) * s_ref[...]               # (C_out, 1)
        y_ref[0] = cen * gain + o_ref[...]
        # Bias cancels inside the norm; it only shifts the reported mean.
        mean_ref[0] = mean + b_ref[...]


def _space_to_depth(x):
    """x [N,C,H,W] -> z [N, 4*C, Hp*Wp] with z[n,(dy*2+dx)*C+c, ph*Wp+pw]
    = pad(x)[n, c, 2*ph+dy, 2*pw+dx].  Bijective (no data duplication)."""
    n, c, h, w = x.shape
    assert h % 2 == 0 and w % 2 == 0, "stride-2 ConvBlock expects even H, W"
    xp = jnp.pad(x, ((0, 0), (0, 0), (1, 1), (1, 1)))
    hp, wp = (h + 2) // 2, (w + 2) // 2
    z = xp.reshape(n, c, hp, 2, wp, 2)
    z = z.transpose(0, 3, 5, 1, 2, 4)                      # (n, dy, dx, c, ph, pw)
    return z.reshape(n, 4 * c, hp * wp), hp, wp


def _pack_weight(weight):
    """weight [C_out, C_in, 4, 4] -> wq [4, C_out, 4*C_in] with
    wq[dh*2+dw, co, (dy*2+dx)*C_in+ci] = weight[co, ci, 2*dh+dy, 2*dw+dx]."""
    c_out, c_in = weight.shape[0], weight.shape[1]
    w6 = weight.reshape(c_out, c_in, 2, 2, 2, 2)           # (co, ci, dh, dy, dw, dx)
    wq = w6.transpose(2, 4, 0, 3, 5, 1)                    # (dh, dw, co, dy, dx, ci)
    return wq.reshape(4, c_out, 4 * c_in)


def _pick_tk(k):
    if k <= 512:
        return k
    for t in (512, 256, 128):
        if k % t == 0:
            return t
    return k


@jax.jit
def conv_block_forward(x, weight, bias, scale, offset):
    """x: [N,C_in,H,W]; weight: [C_out,C_in,4,4]; bias/scale/offset: [C_out]."""
    n, c_in, h, w = x.shape
    c_out = weight.shape[0]
    assert weight.shape[1:] == (c_in, 4, 4)

    z, hp, wp = _space_to_depth(x)                         # ~1x input bytes
    ho, wo = hp - 1, wp - 1
    hw = ho * wo
    L = ho * wp - 1                                        # padded-domain width
    K = 4 * c_in
    tk = _pick_tk(K)
    nk = K // tk

    wq = _pack_weight(weight).astype(jnp.float32)
    b_col = bias.reshape(c_out, 1).astype(jnp.float32)
    s_col = scale.reshape(c_out, 1).astype(jnp.float32)
    o_col = offset.reshape(c_out, 1).astype(jnp.float32)

    kernel = functools.partial(_convblock_kernel, ho=ho, wo=wo, wp=wp)

    y, mean3 = pl.pallas_call(
        kernel,
        out_shape=(
            jax.ShapeDtypeStruct((n, c_out, hw), jnp.float32),
            jax.ShapeDtypeStruct((n, c_out, 1), jnp.float32),
        ),
        grid_spec=pltpu.PrefetchScalarGridSpec(
            num_scalar_prefetch=0,
            grid=(n, nk),
            in_specs=[
                pl.BlockSpec((1, tk, hp * wp), lambda b, k: (b, k, 0)),
                pl.BlockSpec((4, c_out, tk), lambda b, k: (0, 0, k)),
                pl.BlockSpec((c_out, 1), lambda b, k: (0, 0)),
                pl.BlockSpec((c_out, 1), lambda b, k: (0, 0)),
                pl.BlockSpec((c_out, 1), lambda b, k: (0, 0)),
            ],
            out_specs=[
                pl.BlockSpec((1, c_out, hw), lambda b, k: (b, 0, 0)),
                pl.BlockSpec((1, c_out, 1), lambda b, k: (b, 0, 0)),
            ],
            scratch_shapes=[pltpu.VMEM((c_out, L), jnp.float32)],
        ),
        compiler_params=pltpu.CompilerParams(
            dimension_semantics=("parallel", "arbitrary"),
            vmem_limit_bytes=_VMEM_LIMIT,
        ),
    )(z.astype(jnp.float32), wq, b_col, s_col, o_col)

    x_norm = y.reshape(n, c_out, ho, wo)                   # free reshape, no transpose
    input_mean = mean3.reshape(n, c_out)
    return x_norm, input_mean


def _reference(x, weight, bias, scale, offset):
    xr = jnp.where(x >= 0, x, LEAKY_SLOPE * x)
    conv = jax.lax.conv_general_dilated(
        xr, weight, window_strides=(2, 2), padding=((1, 1), (1, 1)),
        dimension_numbers=("NCHW", "OIHW", "NCHW"),
    ) + bias.reshape(1, -1, 1, 1)
    mean = conv.mean(axis=(2, 3), keepdims=True)
    var = ((conv - mean) ** 2).mean(axis=(2, 3), keepdims=True)
    xn = (conv - mean) / jnp.sqrt(var + EPS)
    xn = xn * scale.reshape(1, -1, 1, 1) + offset.reshape(1, -1, 1, 1)
    return xn, conv.mean(axis=(2, 3))


if __name__ == "__main__":
    N, C_IN, C_OUT, H, W = 2, 4, 8, 16, 16

    key = jax.random.PRNGKey(0)
    kx, kw, kb, ks = jax.random.split(key, 4)

    x = jax.random.normal(kx, (N, C_IN, H, W), dtype=jnp.float32)
    # Conv2d init: normal(0, 0.02) weight; bias made nonzero here to exercise
    # the bias->mean path (initial module bias is zero).
    weight = 0.02 * jax.random.normal(kw, (C_OUT, C_IN, 4, 4), dtype=jnp.float32)
    bias = 0.01 * jax.random.normal(kb, (C_OUT,), dtype=jnp.float32)
    # InstanceNormWithStats: scale ~ randn, offset zeros
    scale = jax.random.normal(ks, (C_OUT,), dtype=jnp.float32)
    offset = jnp.zeros((C_OUT,), dtype=jnp.float32)

    x_norm, input_mean = conv_block_forward(x, weight, bias, scale, offset)
    jax.block_until_ready((x_norm, input_mean))

    xn_ref, mean_r = _reference(x, weight, bias, scale, offset)
    assert x_norm.shape == (N, C_OUT, H // 2, W // 2)
    assert input_mean.shape == (N, C_OUT)
    assert jnp.allclose(x_norm, xn_ref, atol=1e-4, rtol=1e-4), \
        float(jnp.max(jnp.abs(x_norm - xn_ref)))
    assert jnp.allclose(input_mean, mean_r, atol=1e-5, rtol=1e-4), \
        float(jnp.max(jnp.abs(input_mean - mean_r)))

    print("KERNEL_OK")
</pallas_src>

<mosaic_0001>
module attributes {stable_mosaic.version = 11 : i64} {
  func.func @_convblock_kernel(%arg0: i32, %arg1: i32, %arg2: memref<1x16x81xf32, #tpu.memory_space<vmem>>, %arg3: memref<4x8x16xf32, #tpu.memory_space<vmem>>, %arg4: memref<8x1xf32, #tpu.memory_space<vmem>>, %arg5: memref<8x1xf32, #tpu.memory_space<vmem>>, %arg6: memref<8x1xf32, #tpu.memory_space<vmem>>, %arg7: memref<1x8x64xf32, #tpu.memory_space<vmem>>, %arg8: memref<1x8x1xf32, #tpu.memory_space<vmem>>, %arg9: memref<8x71xf32, #tpu.memory_space<vmem>>) attributes {dimension_semantics = [#tpu.dimension_semantics<parallel>, #tpu.dimension_semantics<arbitrary>], iteration_bounds = array<i64: 2, 1>, scalar_prefetch = 0 : i64, scratch_operands = 1 : i64, tpu.core_type = #tpu.core_type<tc>, window_params = [{transform_indices = @transform_0, window_bounds = array<i64: 1, 16, 81>}, {transform_indices = @transform_1, window_bounds = array<i64: 4, 8, 16>}, {pipeline_mode = #tpu.pipeline_mode<synchronous>, transform_indices = @transform_2, window_bounds = array<i64: 8, 1>}, {pipeline_mode = #tpu.pipeline_mode<synchronous>, transform_indices = @transform_3, window_bounds = array<i64: 8, 1>}, {pipeline_mode = #tpu.pipeline_mode<synchronous>, transform_indices = @transform_4, window_bounds = array<i64: 8, 1>}, {transform_indices = @transform_5, window_bounds = array<i64: 1, 8, 64>}, {transform_indices = @transform_6, window_bounds = array<i64: 1, 8, 1>}]} {
    %c0 = arith.constant 0 : index
    %c0_0 = arith.constant 0 : index
    %c0_1 = arith.constant 0 : index
    %0 = vector.load %arg2[%c0, %c0_0, %c0_1] : memref<1x16x81xf32, #tpu.memory_space<vmem>>, vector<1x16x81xf32>
    %1 = vector.shape_cast %0 : vector<1x16x81xf32> to vector<16x81xf32>
    %cst = arith.constant 0.000000e+00 : f32
    %2 = vector.broadcast %cst : f32 to vector<16x81xf32>
    %3 = arith.cmpf oge, %1, %2 : vector<16x81xf32>
    %cst_2 = arith.constant 2.000000e-01 : f32
    %4 = vector.broadcast %cst_2 : f32 to vector<16x81xf32>
    %5 = arith.mulf %4, %1 : vector<16x81xf32>
    %6 = arith.select %3, %1, %5 : vector<16x81xi1>, vector<16x81xf32>
    %7 = vector.extract_strided_slice %6 {offsets = [0, 0], sizes = [16, 71], strides = [1, 1]} : vector<16x81xf32> to vector<16x71xf32>
    %c0_3 = arith.constant 0 : index
    %c0_4 = arith.constant 0 : index
    %c0_5 = arith.constant 0 : index
    %8 = vector.load %arg3[%c0_3, %c0_4, %c0_5] : memref<4x8x16xf32, #tpu.memory_space<vmem>>, vector<1x8x16xf32>
    %9 = vector.shape_cast %8 : vector<1x8x16xf32> to vector<8x16xf32>
    %cst_6 = arith.constant dense<0.000000e+00> : vector<8x71xf32>
    %10 = tpu.matmul %9, %7, %cst_6 {dimension_numbers = #tpu.dot_dimension_numbers<[1], [0], [0], [1], [0, 0, 1, 1], [], []>} : vector<8x16xf32>, vector<16x71xf32>, vector<8x71xf32> -> vector<8x71xf32>
    %11 = vector.extract_strided_slice %6 {offsets = [0, 1], sizes = [16, 71], strides = [1, 1]} : vector<16x81xf32> to vector<16x71xf32>
    %c1 = arith.constant 1 : index
    %c0_7 = arith.constant 0 : index
    %c0_8 = arith.constant 0 : index
    %12 = vector.load %arg3[%c1, %c0_7, %c0_8] : memref<4x8x16xf32, #tpu.memory_space<vmem>>, vector<1x8x16xf32>
    %13 = vector.shape_cast %12 : vector<1x8x16xf32> to vector<8x16xf32>
    %cst_9 = arith.constant dense<0.000000e+00> : vector<8x71xf32>
    %14 = tpu.matmul %13, %11, %cst_9 {dimension_numbers = #tpu.dot_dimension_numbers<[1], [0], [0], [1], [0, 0, 1, 1], [], []>} : vector<8x16xf32>, vector<16x71xf32>, vector<8x71xf32> -> vector<8x71xf32>
    %15 = arith.addf %10, %14 : vector<8x71xf32>
    %16 = vector.extract_strided_slice %6 {offsets = [0, 9], sizes = [16, 71], strides = [1, 1]} : vector<16x81xf32> to vector<16x71xf32>
    %c2 = arith.constant 2 : index
    %c0_10 = arith.constant 0 : index
    %c0_11 = arith.constant 0 : index
    %17 = vector.load %arg3[%c2, %c0_10, %c0_11] : memref<4x8x16xf32, #tpu.memory_space<vmem>>, vector<1x8x16xf32>
    %18 = vector.shape_cast %17 : vector<1x8x16xf32> to vector<8x16xf32>
    %cst_12 = arith.constant dense<0.000000e+00> : vector<8x71xf32>
    %19 = tpu.matmul %18, %16, %cst_12 {dimension_numbers = #tpu.dot_dimension_numbers<[1], [0], [0], [1], [0, 0, 1, 1], [], []>} : vector<8x16xf32>, vector<16x71xf32>, vector<8x71xf32> -> vector<8x71xf32>
    %20 = arith.addf %15, %19 : vector<8x71xf32>
    %21 = vector.extract_strided_slice %6 {offsets = [0, 10], sizes = [16, 71], strides = [1, 1]} : vector<16x81xf32> to vector<16x71xf32>
    %c3 = arith.constant 3 : index
    %c0_13 = arith.constant 0 : index
    %c0_14 = arith.constant 0 : index
    %22 = vector.load %arg3[%c3, %c0_13, %c0_14] : memref<4x8x16xf32, #tpu.memory_space<vmem>>, vector<1x8x16xf32>
    %23 = vector.shape_cast %22 : vector<1x8x16xf32> to vector<8x16xf32>
    %cst_15 = arith.constant dense<0.000000e+00> : vector<8x71xf32>
    %24 = tpu.matmul %23, %21, %cst_15 {dimension_numbers = #tpu.dot_dimension_numbers<[1], [0], [0], [1], [0, 0, 1, 1], [], []>} : vector<8x16xf32>, vector<16x71xf32>, vector<8x71xf32> -> vector<8x71xf32>
    %25 = arith.addf %20, %24 : vector<8x71xf32>
    %c0_i32 = arith.constant 0 : i32
    %26 = arith.cmpi eq, %arg1, %c0_i32 : i32
    %27 = arith.extui %26 : i1 to i32
    %c0_i32_16 = arith.constant 0 : i32
    %28 = arith.cmpi ne, %27, %c0_i32_16 : i32
    scf.if %28 {
      %c0_21 = arith.constant 0 : index
      %c0_22 = arith.constant 0 : index
      %35 = vector.load %arg9[%c0_21, %c0_22] : memref<8x71xf32, #tpu.memory_space<vmem>>, vector<8x71xf32>
      tpu.vector_store %arg9[%c0_21, %c0_22], %25 {strides = array<i32>} : memref<8x71xf32, #tpu.memory_space<vmem>>, vector<8x71xf32>,
    } else {
    }
    %c0_i32_17 = arith.constant 0 : i32
    %29 = arith.cmpi sgt, %arg1, %c0_i32_17 : i32
    %30 = arith.extui %29 : i1 to i32
    %c0_i32_18 = arith.constant 0 : i32
    %31 = arith.cmpi ne, %30, %c0_i32_18 : i32
    scf.if %31 {
      %c0_21 = arith.constant 0 : index
      %c0_22 = arith.constant 0 : index
      %35 = vector.load %arg9[%c0_21, %c0_22] : memref<8x71xf32, #tpu.memory_space<vmem>>, vector<8x71xf32>
      %36 = arith.addf %35, %25 : vector<8x71xf32>
      %c0_23 = arith.constant 0 : index
      %c0_24 = arith.constant 0 : index
      %37 = vector.load %arg9[%c0_23, %c0_24] : memref<8x71xf32, #tpu.memory_space<vmem>>, vector<8x71xf32>
      tpu.vector_store %arg9[%c0_23, %c0_24], %36 {strides = array<i32>} : memref<8x71xf32, #tpu.memory_space<vmem>>, vector<8x71xf32>,
    } else {
    }
    %c0_i32_19 = arith.constant 0 : i32
    %32 = arith.cmpi eq, %arg1, %c0_i32_19 : i32
    %33 = arith.extui %32 : i1 to i32
    %c0_i32_20 = arith.constant 0 : i32
    %34 = arith.cmpi ne, %33, %c0_i32_20 : i32
    scf.if %34 {
      %c0_21 = arith.constant 0 : index
      %c0_22 = arith.constant 0 : index
      %35 = vector.load %arg9[%c0_21, %c0_22] : memref<8x71xf32, #tpu.memory_space<vmem>>, vector<8x8xf32>
      %c0_23 = arith.constant 0 : index
      %c0_24 = arith.constant 0 : index
      %c0_25 = arith.constant 0 : index
      %36 = vector.load %arg7[%c0_23, %c0_24, %c0_25] : memref<1x8x64xf32, #tpu.memory_space<vmem>>, vector<1x8x8xf32>
      %37 = vector.shape_cast %36 : vector<1x8x8xf32> to vector<8x8xf32>
      %38 = vector.shape_cast %35 : vector<8x8xf32> to vector<1x8x8xf32>
      tpu.vector_store %arg7[%c0_23, %c0_24, %c0_25], %38 {strides = array<i32>} : memref<1x8x64xf32, #tpu.memory_space<vmem>>, vector<1x8x8xf32>,
      %c0_26 = arith.constant 0 : index
      %c9 = arith.constant 9 : index
      %39 = vector.load %arg9[%c0_26, %c9] : memref<8x71xf32, #tpu.memory_space<vmem>>, vector<8x8xf32>
      %c0_27 = arith.constant 0 : index
      %c0_28 = arith.constant 0 : index
      %c8 = arith.constant 8 : index
      %40 = vector.load %arg7[%c0_27, %c0_28, %c8] : memref<1x8x64xf32, #tpu.memory_space<vmem>>, vector<1x8x8xf32>
      %41 = vector.shape_cast %40 : vector<1x8x8xf32> to vector<8x8xf32>
      %42 = vector.shape_cast %39 : vector<8x8xf32> to vector<1x8x8xf32>
      tpu.vector_store %arg7[%c0_27, %c0_28, %c8], %42 {strides = array<i32>} : memref<1x8x64xf32, #tpu.memory_space<vmem>>, vector<1x8x8xf32>,
      %c0_29 = arith.constant 0 : index
      %c18 = arith.constant 18 : index
      %43 = vector.load %arg9[%c0_29, %c18] : memref<8x71xf32, #tpu.memory_space<vmem>>, vector<8x8xf32>
      %c0_30 = arith.constant 0 : index
      %c0_31 = arith.constant 0 : index
      %c16 = arith.constant 16 : index
      %44 = vector.load %arg7[%c0_30, %c0_31, %c16] : memref<1x8x64xf32, #tpu.memory_space<vmem>>, vector<1x8x8xf32>
      %45 = vector.shape_cast %44 : vector<1x8x8xf32> to vector<8x8xf32>
      %46 = vector.shape_cast %43 : vector<8x8xf32> to vector<1x8x8xf32>
      tpu.vector_store %arg7[%c0_30, %c0_31, %c16], %46 {strides = array<i32>} : memref<1x8x64xf32, #tpu.memory_space<vmem>>, vector<1x8x8xf32>,
      %c0_32 = arith.constant 0 : index
      %c27 = arith.constant 27 : index
      %47 = vector.load %arg9[%c0_32, %c27] : memref<8x71xf32, #tpu.memory_space<vmem>>, vector<8x8xf32>
      %c0_33 = arith.constant 0 : index
      %c0_34 = arith.constant 0 : index
      %c24 = arith.constant 24 : index
      %48 = vector.load %arg7[%c0_33, %c0_34, %c24] : memref<1x8x64xf32, #tpu.memory_space<vmem>>, vector<1x8x8xf32>
      %49 = vector.shape_cast %48 : vector<1x8x8xf32> to vector<8x8xf32>
      %50 = vector.shape_cast %47 : vector<8x8xf32> to vector<1x8x8xf32>
      tpu.vector_store %arg7[%c0_33, %c0_34, %c24], %50 {strides = array<i32>} : memref<1x8x64xf32, #tpu.memory_space<vmem>>, vector<1x8x8xf32>,
      %c0_35 = arith.constant 0 : index
      %c36 = arith.constant 36 : index
      %51 = vector.load %arg9[%c0_35, %c36] : memref<8x71xf32, #tpu.memory_space<vmem>>, vector<8x8xf32>
      %c0_36 = arith.constant 0 : index
      %c0_37 = arith.constant 0 : index
      %c32 = arith.constant 32 : index
      %52 = vector.load %arg7[%c0_36, %c0_37, %c32] : memref<1x8x64xf32, #tpu.memory_space<vmem>>, vector<1x8x8xf32>
      %53 = vector.shape_cast %52 : vector<1x8x8xf32> to vector<8x8xf32>
      %54 = vector.shape_cast %51 : vector<8x8xf32> to vector<1x8x8xf32>
      tpu.vector_store %arg7[%c0_36, %c0_37, %c32], %54 {strides = array<i32>} : memref<1x8x64xf32, #tpu.memory_space<vmem>>, vector<1x8x8xf32>,
      %c0_38 = arith.constant 0 : index
      %c45 = arith.constant 45 : index
      %55 = vector.load %arg9[%c0_38, %c45] : memref<8x71xf32, #tpu.memory_space<vmem>>, vector<8x8xf32>
      %c0_39 = arith.constant 0 : index
      %c0_40 = arith.constant 0 : index
      %c40 = arith.constant 40 : index
      %56 = vector.load %arg7[%c0_39, %c0_40, %c40] : memref<1x8x64xf32, #tpu.memory_space<vmem>>, vector<1x8x8xf32>
      %57 = vector.shape_cast %56 : vector<1x8x8xf32> to vector<8x8xf32>
      %58 = vector.shape_cast %55 : vector<8x8xf32> to vector<1x8x8xf32>
      tpu.vector_store %arg7[%c0_39, %c0_40, %c40], %58 {strides = array<i32>} : memref<1x8x64xf32, #tpu.memory_space<vmem>>, vector<1x8x8xf32>,
      %c0_41 = arith.constant 0 : index
      %c54 = arith.constant 54 : index
      %59 = vector.load %arg9[%c0_41, %c54] : memref<8x71xf32, #tpu.memory_space<vmem>>, vector<8x8xf32>
      %c0_42 = arith.constant 0 : index
      %c0_43 = arith.constant 0 : index
      %c48 = arith.constant 48 : index
      %60 = vector.load %arg7[%c0_42, %c0_43, %c48] : memref<1x8x64xf32, #tpu.memory_space<vmem>>, vector<1x8x8xf32>
      %61 = vector.shape_cast %60 : vector<1x8x8xf32> to vector<8x8xf32>
      %62 = vector.shape_cast %59 : vector<8x8xf32> to vector<1x8x8xf32>
      tpu.vector_store %arg7[%c0_42, %c0_43, %c48], %62 {strides = array<i32>} : memref<1x8x64xf32, #tpu.memory_space<vmem>>, vector<1x8x8xf32>,
      %c0_44 = arith.constant 0 : index
      %c63 = arith.constant 63 : index
      %63 = vector.load %arg9[%c0_44, %c63] : memref<8x71xf32, #tpu.memory_space<vmem>>, vector<8x8xf32>
      %c0_45 = arith.constant 0 : index
      %c0_46 = arith.constant 0 : index
      %c56 = arith.constant 56 : index
      %64 = vector.load %arg7[%c0_45, %c0_46, %c56] : memref<1x8x64xf32, #tpu.memory_space<vmem>>, vector<1x8x8xf32>
      %65 = vector.shape_cast %64 : vector<1x8x8xf32> to vector<8x8xf32>
      %66 = vector.shape_cast %63 : vector<8x8xf32> to vector<1x8x8xf32>
      tpu.vector_store %arg7[%c0_45, %c0_46, %c56], %66 {strides = array<i32>} : memref<1x8x64xf32, #tpu.memory_space<vmem>>, vector<1x8x8xf32>,
      %c0_47 = arith.constant 0 : index
      %c0_48 = arith.constant 0 : index
      %c0_49 = arith.constant 0 : index
      %67 = vector.load %arg7[%c0_47, %c0_48, %c0_49] : memref<1x8x64xf32, #tpu.memory_space<vmem>>, vector<1x8x64xf32>
      %68 = vector.shape_cast %67 : vector<1x8x64xf32> to vector<8x64xf32>
      %cst_50 = arith.constant dense<0.000000e+00> : vector<8xf32>
      %69 = vector.multi_reduction <add>, %68, %cst_50 [1] : vector<8x64xf32> to vector<8xf32>
      %70 = vector.shape_cast %69 : vector<8xf32> to vector<8x1xf32>
      %cst_51 = arith.constant 1.562500e-02 : f32
      %71 = vector.broadcast %cst_51 : f32 to vector<8x1xf32>
      %72 = arith.mulf %70, %71 : vector<8x1xf32>
      %73 = vector.broadcast %72 : vector<8x1xf32> to vector<8x64xf32>
      %74 = arith.subf %68, %73 : vector<8x64xf32>
      %75 = arith.mulf %74, %74 : vector<8x64xf32>
      %cst_52 = arith.constant dense<0.000000e+00> : vector<8xf32>
      %76 = vector.multi_reduction <add>, %75, %cst_52 [1] : vector<8x64xf32> to vector<8xf32>
      %77 = vector.shape_cast %76 : vector<8xf32> to vector<8x1xf32>
      %cst_53 = arith.constant 1.562500e-02 : f32
      %78 = vector.broadcast %cst_53 : f32 to vector<8x1xf32>
      %79 = arith.mulf %77, %78 : vector<8x1xf32>
      %cst_54 = arith.constant 9.99999974E-6 : f32
      %80 = vector.broadcast %cst_54 : f32 to vector<8x1xf32>
      %81 = arith.addf %79, %80 : vector<8x1xf32>
      %82 = math.rsqrt %81 : vector<8x1xf32>
      %c0_55 = arith.constant 0 : index
      %c0_56 = arith.constant 0 : index
      %83 = vector.load %arg5[%c0_55, %c0_56] : memref<8x1xf32, #tpu.memory_space<vmem>>, vector<8x1xf32>
      %84 = arith.mulf %82, %83 : vector<8x1xf32>
      %85 = vector.broadcast %84 : vector<8x1xf32> to vector<8x64xf32>
      %86 = arith.mulf %74, %85 : vector<8x64xf32>
      %c0_57 = arith.constant 0 : index
      %c0_58 = arith.constant 0 : index
      %87 = vector.load %arg6[%c0_57, %c0_58] : memref<8x1xf32, #tpu.memory_space<vmem>>, vector<8x1xf32>
      %88 = vector.broadcast %87 : vector<8x1xf32> to vector<8x64xf32>
      %89 = arith.addf %86, %88 : vector<8x64xf32>
      %c0_59 = arith.constant 0 : index
      %c0_60 = arith.constant 0 : index
      %c0_61 = arith.constant 0 : index
      %90 = vector.load %arg7[%c0_59, %c0_60, %c0_61] : memref<1x8x64xf32, #tpu.memory_space<vmem>>, vector<1x8x64xf32>
      %91 = vector.shape_cast %90 : vector<1x8x64xf32> to vector<8x64xf32>
      %92 = vector.shape_cast %89 : vector<8x64xf32> to vector<1x8x64xf32>
      tpu.vector_store %arg7[%c0_59, %c0_60, %c0_61], %92 {strides = array<i32>} : memref<1x8x64xf32, #tpu.memory_space<vmem>>, vector<1x8x64xf32>,
      %c0_62 = arith.constant 0 : index
      %c0_63 = arith.constant 0 : index
      %93 = vector.load %arg4[%c0_62, %c0_63] : memref<8x1xf32, #tpu.memory_space<vmem>>, vector<8x1xf32>
      %94 = arith.addf %72, %93 : vector<8x1xf32>
      %c0_64 = arith.constant 0 : index
      %c0_65 = arith.constant 0 : index
      %c0_66 = arith.constant 0 : index
      %95 = vector.load %arg8[%c0_64, %c0_65, %c0_66] : memref<1x8x1xf32, #tpu.memory_space<vmem>>, vector<1x8x1xf32>
      %96 = vector.shape_cast %95 : vector<1x8x1xf32> to vector<8x1xf32>
      %97 = vector.shape_cast %94 : vector<8x1xf32> to vector<1x8x1xf32>
      tpu.vector_store %arg8[%c0_64, %c0_65, %c0_66], %97 {strides = array<i32>} : memref<1x8x1xf32, #tpu.memory_space<vmem>>, vector<1x8x1xf32>,
    } else {
    }
    return
  }
  func.func @transform_0(%arg0: i32, %arg1: i32) -> (i32, i32, i32) {
    %c0_i32 = arith.constant 0 : i32
    %c0_i32_0 = arith.constant 0 : i32
    return %arg0, %arg1, %c0_i32 : i32, i32, i32
  }
  func.func @transform_1(%arg0: i32, %arg1: i32) -> (i32, i32, i32) {
    %c0_i32 = arith.constant 0 : i32
    %c0_i32_0 = arith.constant 0 : i32
    %c0_i32_1 = arith.constant 0 : i32
    return %c0_i32, %c0_i32_0, %arg1 : i32, i32, i32
  }
  func.func @transform_2(%arg0: i32, %arg1: i32) -> (i32, i32) {
    %c0_i32 = arith.constant 0 : i32
    %c0_i32_0 = arith.constant 0 : i32
    %c0_i32_1 = arith.constant 0 : i32
    return %c0_i32, %c0_i32_0 : i32, i32
  }
  func.func @transform_3(%arg0: i32, %arg1: i32) -> (i32, i32) {
    %c0_i32 = arith.constant 0 : i32
    %c0_i32_0 = arith.constant 0 : i32
    %c0_i32_1 = arith.constant 0 : i32
    return %c0_i32, %c0_i32_0 : i32, i32
  }
  func.func @transform_4(%arg0: i32, %arg1: i32) -> (i32, i32) {
    %c0_i32 = arith.constant 0 : i32
    %c0_i32_0 = arith.constant 0 : i32
    %c0_i32_1 = arith.constant 0 : i32
    return %c0_i32, %c0_i32_0 : i32, i32
  }
  func.func @transform_5(%arg0: i32, %arg1: i32) -> (i32, i32, i32) {
    %c0_i32 = arith.constant 0 : i32
    %c0_i32_0 = arith.constant 0 : i32
    %c0_i32_1 = arith.constant 0 : i32
    return %arg0, %c0_i32, %c0_i32_0 : i32, i32, i32
  }
  func.func @transform_6(%arg0: i32, %arg1: i32) -> (i32, i32, i32) {
    %c0_i32 = arith.constant 0 : i32
    %c0_i32_0 = arith.constant 0 : i32
    %c0_i32_1 = arith.constant 0 : i32
    return %arg0, %c0_i32, %c0_i32_0 : i32, i32, i32
  }
}

</mosaic_0001>

<llo_original>
// kernel: conv_block_forward.1
$region0: #{conv_block_forward.1}
  #allocation0 [shape = 'u32[]', space=smem, size = 0x4, offset = 0x4, fixed_abs, tag = 'smem constant byte address 0x4 - core index']
  #allocation1 [shape = 'u32[72,128]{1,0:T(1,128)}', space=vmem, size = 0x9000, scoped, tag = 'internal scratch']
  #allocation2 [shape = 'f32[8,71]{1,0:T(8,128)}', space=vmem, size = 0x1000, scoped, tag = 'scratch operand']
  %s0 = inlined_call_operand.vmem [shape: f32[2,16,81], index: 0, kind: input, shape index: {}]
  %s1 = inlined_call_operand.vmem [shape: f32[4,8,16], index: 1, kind: input, shape index: {}]
  %s2 = inlined_call_operand.vmem [shape: f32[8,1], index: 2, kind: input, shape index: {}]
  %s3 = inlined_call_operand.vmem [shape: f32[8,1], index: 3, kind: input, shape index: {}]
  %s4 = inlined_call_operand.vmem [shape: f32[8,1], index: 4, kind: input, shape index: {}]
  %s5 = inlined_call_operand.vmem [shape: f32[2,8,64], index: 5, kind: output, shape index: {0}]
  %s6 = inlined_call_operand.vmem [shape: f32[2,8,1], index: 6, kind: output, shape index: {1}]
  %7 = xla_tuple %s5, %s6
  %s8 = sld [smem:[#allocation0]]
  $region73: #{conv_block_forward.1} parent=0
    _
  %s10 = ssub.s32 1, %s8
  %s11 = scalar_select 0, %s10, %s8
  loop: start=0, step=1, limit=4
  $region2: #{conv_block_forward.1} parent=0 // loop_pre_header
    _
  $region3: #{conv_block_forward.1} parent=0 // loop_header
    %s13 = sphi 0, %s17
    %p14 = scmp.ge.s32.totalorder %s13, 4
    %s20 = sphi 0, %s32
    %s21 = sphi 0, %s28
    %s22 = sphi 0, %s20
    %s23 = sphi 0, %s21
    %s24 = sphi 0, %s22
    %s25 = sphi 0, %s23
    %s37 = sphi 0, %s39
    %s40 = sphi 0, %s37
    %s41 = sphi 0, %s40
    %s57 = sphi 0, %s41
    %s63 = sphi 0, %s65
    %s66 = sphi 0, %s63
    %s67 = sphi 0, %s66
    %s83 = sphi 0, %s67
    %s87 = sphi 0, %s87
    %s89 = sphi 0, %s87
    %s90 = sphi 0, %s89
    %s104 = sphi 0, %s90
    %s108 = sphi 0, %s108
    %s110 = sphi 0, %s108
    %s111 = sphi 0, %s110
    %s125 = sphi 0, %s111
    %s129 = sphi 0, %s129
    %s131 = sphi 0, %s129
    %s132 = sphi 0, %s131
    %s146 = sphi 0, %s132
    %s152 = sphi 0, %s154
    %s155 = sphi 0, %s152
    %s156 = sphi 0, %s155
    %s172 = sphi 0, %s156
    %s178 = sphi 0, %s180
    %s181 = sphi 0, %s178
    %s182 = sphi 0, %s181
    %s198 = sphi 0, %s182
  $region4: #{conv_block_forward.1} parent=0 // loop_header_branch
    %16 = sbr.rel (%p14) target = $region8
  $region5: #{conv_block_forward.1} parent=0 // loop_body
    %s18 = ssub.s32 %s13, 1
    %s19 = ssub.s32 %s13, 2
    %s26 = sadd.s32 1, %s21
    %p27 = scmp.ge.s32.totalorder %s26, 1
    %s28 = scalar_select %p27, 0, %s26
    %s29 = sadd.s32 1, %s20
    %s30 = scalar_select %p27, %s29, %s20
    %p31 = scmp.ge.s32.totalorder %s30, 2
    %s32 = scalar_select %p31, 0, %s30
    %s33 = ssub.s32 %s20, %s32
    %s34 = ssub.s32 %s21, %s28
    %s35 = sor.u32 %s33, %s34
    %p36 = scmp.eq.s32.totalorder %s35, 0
    %s38 = sadd.s32 %s37, 1
    %s39 = scalar_select %p36, %s37, %s38
    %p42 = pneg %p36
    %p43 = scmp.eq.s32.totalorder %s13, 1
    %p44 = por %p42, %p43
    %p45 = scmp.ne.s32.totalorder %s37, %s40
    %p46 = scmp.eq.s32.totalorder %s13, 0
    %p47 = por %p45, %p46
    %p48 = scmp.ne.s32.totalorder %s37, %s40
    %p49 = scmp.eq.s32.totalorder %s18, 1
    %p50 = por %p48, %p49
    %p51 = scmp.ne.s32.totalorder %s40, %s41
    %p52 = scmp.eq.s32.totalorder %s18, 0
    %p53 = por %p51, %p52
    %p54 = scmp.ne.s32.totalorder %s40, %s41
    %p55 = scmp.eq.s32.totalorder %s19, 1
    %p56 = por %p54, %p55
    %p58 = scmp.ne.s32.totalorder %s41, %s57
    %p59 = scmp.eq.s32.totalorder %s19, 0
    %p60 = por %p58, %p59
    %s61 = ssub.s32 %s21, %s28
    %p62 = scmp.eq.s32.totalorder %s61, 0
    %s64 = sadd.s32 %s63, 1
    %s65 = scalar_select %p62, %s63, %s64
    %p68 = pneg %p62
    %p69 = scmp.eq.s32.totalorder %s13, 1
    %p70 = por %p68, %p69
    %p71 = scmp.ne.s32.totalorder %s63, %s66
    %p72 = scmp.eq.s32.totalorder %s13, 0
    %p73 = por %p71, %p72
    %p74 = scmp.ne.s32.totalorder %s63, %s66
    %p75 = scmp.eq.s32.totalorder %s18, 1
    %p76 = por %p74, %p75
    %p77 = scmp.ne.s32.totalorder %s66, %s67
    %p78 = scmp.eq.s32.totalorder %s18, 0
    %p79 = por %p77, %p78
    %p80 = scmp.ne.s32.totalorder %s66, %s67
    %p81 = scmp.eq.s32.totalorder %s19, 1
    %p82 = por %p80, %p81
    %p84 = scmp.ne.s32.totalorder %s67, %s83
    %p85 = scmp.eq.s32.totalorder %s19, 0
    %p86 = por %p84, %p85
    %s88 = sadd.s32 %s87, 1
    %p91 = scmp.eq.s32.totalorder %s13, 1
    %p92 = scmp.ne.s32.totalorder %s87, %s89
    %p93 = scmp.eq.s32.totalorder %s13, 0
    %p94 = por %p92, %p93
    %p95 = scmp.ne.s32.totalorder %s87, %s89
    %p96 = scmp.eq.s32.totalorder %s18, 1
    %p97 = por %p95, %p96
    %p98 = scmp.ne.s32.totalorder %s89, %s90
    %p99 = scmp.eq.s32.totalorder %s18, 0
    %p100 = por %p98, %p99
    %p101 = scmp.ne.s32.totalorder %s89, %s90
    %p102 = scmp.eq.s32.totalorder %s19, 1
    %p103 = por %p101, %p102
    %p105 = scmp.ne.s32.totalorder %s90, %s104
    %p106 = scmp.eq.s32.totalorder %s19, 0
    %p107 = por %p105, %p106
    %s109 = sadd.s32 %s108, 1
    %p112 = scmp.eq.s32.totalorder %s13, 1
    %p113 = scmp.ne.s32.totalorder %s108, %s110
    %p114 = scmp.eq.s32.totalorder %s13, 0
    %p115 = por %p113, %p114
    %p116 = scmp.ne.s32.totalorder %s108, %s110
    %p117 = scmp.eq.s32.totalorder %s18, 1
    %p118 = por %p116, %p117
    %p119 = scmp.ne.s32.totalorder %s110, %s111
    %p120 = scmp.eq.s32.totalorder %s18, 0
    %p121 = por %p119, %p120
    %p122 = scmp.ne.s32.totalorder %s110, %s111
    %p123 = scmp.eq.s32.totalorder %s19, 1
    %p124 = por %p122, %p123
    %p126 = scmp.ne.s32.totalorder %s111, %s125
    %p127 = scmp.eq.s32.totalorder %s19, 0
    %p128 = por %p126, %p127
    %s130 = sadd.s32 %s129, 1
    %p133 = scmp.eq.s32.totalorder %s13, 1
    %p134 = scmp.ne.s32.totalorder %s129, %s131
    %p135 = scmp.eq.s32.totalorder %s13, 0
    %p136 = por %p134, %p135
    %p137 = scmp.ne.s32.totalorder %s129, %s131
    %p138 = scmp.eq.s32.totalorder %s18, 1
    %p139 = por %p137, %p138
    %p140 = scmp.ne.s32.totalorder %s131, %s132
    %p141 = scmp.eq.s32.totalorder %s18, 0
    %p142 = por %p140, %p141
    %p143 = scmp.ne.s32.totalorder %s131, %s132
    %p144 = scmp.eq.s32.totalorder %s19, 1
    %p145 = por %p143, %p144
    %p147 = scmp.ne.s32.totalorder %s132, %s146
    %p148 = scmp.eq.s32.totalorder %s19, 0
    %p149 = por %p147, %p148
    %s150 = ssub.s32 %s20, %s32
    %p151 = scmp.eq.s32.totalorder %s150, 0
    %s153 = sadd.s32 %s152, 1
    %s154 = scalar_select %p151, %s152, %s153
    %p157 = pneg %p151
    %p158 = scmp.eq.s32.totalorder %s13, 1
    %p159 = por %p157, %p158
    %p160 = scmp.ne.s32.totalorder %s152, %s155
    %p161 = scmp.eq.s32.totalorder %s13, 0
    %p162 = por %p160, %p161
    %p163 = scmp.ne.s32.totalorder %s152, %s155
    %p164 = scmp.eq.s32.totalorder %s18, 1
    %p165 = por %p163, %p164
    %p166 = scmp.ne.s32.totalorder %s155, %s156
    %p167 = scmp.eq.s32.totalorder %s18, 0
    %p168 = por %p166, %p167
    %p169 = scmp.ne.s32.totalorder %s155, %s156
    %p170 = scmp.eq.s32.totalorder %s19, 1
    %p171 = por %p169, %p170
    %p173 = scmp.ne.s32.totalorder %s156, %s172
    %p174 = scmp.eq.s32.totalorder %s19, 0
    %p175 = por %p173, %p174
    %s176 = ssub.s32 %s20, %s32
    %p177 = scmp.eq.s32.totalorder %s176, 0
    %s179 = sadd.s32 %s178, 1
    %s180 = scalar_select %p177, %s178, %s179
    %p183 = pneg %p177
    %p184 = scmp.eq.s32.totalorder %s13, 1
    %p185 = por %p183, %p184
    %p186 = scmp.ne.s32.totalorder %s178, %s181
    %p187 = scmp.eq.s32.totalorder %s13, 0
    %p188 = por %p186, %p187
    %p189 = scmp.ne.s32.totalorder %s178, %s181
    %p190 = scmp.eq.s32.totalorder %s18, 1
    %p191 = por %p189, %p190
    %p192 = scmp.ne.s32.totalorder %s181, %s182
    %p193 = scmp.eq.s32.totalorder %s18, 0
    %p194 = por %p192, %p193
    %p195 = scmp.ne.s32.totalorder %s181, %s182
    %p196 = scmp.eq.s32.totalorder %s19, 1
    %p197 = por %p195, %p196
    %p199 = scmp.ne.s32.totalorder %s182, %s198
    %p200 = scmp.eq.s32.totalorder %s19, 0
    %p201 = por %p199, %p200
    %p202 = scmp.le.s32.totalorder 1, %s13
    %p203 = scmp.lt.s32.totalorder %s13, 3
    %p204 = pnand %p202, %p203
    %p205 = pneg %p204
    // Predicated region
    $region9: #{conv_block_forward.1} parent=5 // pred_check
      _
    $region10: #{conv_block_forward.1} parent=5 // pred_check_branch
      %207 = sbr.rel (%p204) target = $region12
    $region11: #{conv_block_forward.1} parent=5 // pred_region
      %s208 = ssub.s32 %s13, 1
      // Predicated region
      $region13: #{conv_block_forward.1} parent=11 // pred_check
        %p209 = pneg %p79
      $region14: #{conv_block_forward.1} parent=11 // pred_check_branch
        %211 = sbr.rel (%p209) target = $region16
      $region15: #{conv_block_forward.1} parent=11 // pred_region
        %p212 = scmp.lt.s32.totalorder %s23, 0
        %s213 = scalar_select %p212, %s23, 0
        %s214 = smul.addr %s213, 8
        %s215 = scalar_lea.vmem %s1, %s214
      $region16: #{conv_block_forward.1} parent=11 // pred_fallthru
        _
      // Predicated region
      $region17: #{conv_block_forward.1} parent=11 // pred_check
        %p216 = pneg %p100
      $region18: #{conv_block_forward.1} parent=11 // pred_check_branch
        %218 = sbr.rel (%p216) target = $region20
      $region19: #{conv_block_forward.1} parent=11 // pred_region
        _
      $region20: #{conv_block_forward.1} parent=11 // pred_fallthru
        _
      // Predicated region
      $region21: #{conv_block_forward.1} parent=11 // pred_check
        %p219 = pneg %p121
      $region22: #{conv_block_forward.1} parent=11 // pred_check_branch
        %221 = sbr.rel (%p219) target = $region24
      $region23: #{conv_block_forward.1} parent=11 // pred_region
        _
      $region24: #{conv_block_forward.1} parent=11 // pred_fallthru
        _
      // Predicated region
      $region25: #{conv_block_forward.1} parent=11 // pred_check
        %p222 = pneg %p142
      $region26: #{conv_block_forward.1} parent=11 // pred_check_branch
        %224 = sbr.rel (%p222) target = $region28
      $region27: #{conv_block_forward.1} parent=11 // pred_region
        _
      $region28: #{conv_block_forward.1} parent=11 // pred_fallthru
        _
    $region12: #{conv_block_forward.1} parent=5 // pred_fallthru
      _
    %p225 = scmp.lt.s32.totalorder %s13, 2
    // Predicated region
    $region29: #{conv_block_forward.1} parent=5 // pred_check
      %p226 = pneg %p225
    $region30: #{conv_block_forward.1} parent=5 // pred_check_branch
      %228 = sbr.rel (%p226) target = $region32
    $region31: #{conv_block_forward.1} parent=5 // pred_region
      // Predicated region
      $region33: #{conv_block_forward.1} parent=31 // pred_check
        %p229 = pneg %p47
      $region34: #{conv_block_forward.1} parent=31 // pred_check_branch
        %231 = sbr.rel (%p229) target = $region36
      $region35: #{conv_block_forward.1} parent=31 // pred_region
        %s232 = smul.u32 2, %s21
        %p233 = scmp.lt.s32.totalorder %s20, 1
        %s234 = scalar_select %p233, %s20, 1
        %p235 = scmp.lt.s32.totalorder %s232, 1
        %s236 = scalar_select %p235, %s232, 1
        %s237 = smul.addr %s234, 2
        %s238 = sadd.s32 %s236, %s237
        %s239 = smul.addr %s238, 8
        %s240 = scalar_lea.vmem %s0, %s239
        %s241 = smul.u32 2, %s21
      $region36: #{conv_block_forward.1} parent=31 // pred_fallthru
        _
    $region32: #{conv_block_forward.1} parent=5 // pred_fallthru
      _
    %p242 = scmp.le.s32.totalorder 1, %s13
    %p243 = scmp.lt.s32.totalorder %s13, 3
    %p244 = pnand %p242, %p243
    %p245 = pneg %p244
    // Predicated region
    $region37: #{conv_block_forward.1} parent=5 // pred_check
      _
    $region38: #{conv_block_forward.1} parent=5 // pred_check_branch
      %247 = sbr.rel (%p244) target = $region40
    $region39: #{conv_block_forward.1} parent=5 // pred_region
      %s248 = ssub.s32 %s13, 1
      %s249 = smul.u32 2, %s23
      %p250 = scmp.lt.s32.totalorder %s22, 1
      %s251 = scalar_select %p250, %s22, 1
      %p252 = scmp.lt.s32.totalorder %s249, 1
      %s253 = scalar_select %p252, %s249, 1
      %s254 = smul.addr %s251, 2
      %s255 = sadd.s32 %s253, %s254
      %s256 = smul.addr %s255, 8
      %s257 = scalar_lea.vmem %s0, %s256
      %p258 = pneg %p53
      %p259 = pneg %p50
      %p260 = scmp.lt.s32.totalorder %s23, 0
      %s261 = scalar_select %p260, %s23, 0
      %s262 = smul.addr %s261, 8
      %s263 = scalar_lea.vmem %s1, %s262
      %p264 = pneg %p79
      %p265 = pneg %p76
      %p266 = pneg %p100
      %p267 = pneg %p97
      %p268 = pneg %p121
      %p269 = pneg %p118
      %p270 = pneg %p142
      %p271 = pneg %p139
      %p272 = pneg %p168
      %p273 = pneg %p165
      %p274 = scmp.lt.s32.totalorder %s22, 1
      %s275 = scalar_select %p274, %s22, 1
      %s276 = smul.addr %s275, 8
      %s277 = scalar_lea.vmem %s5, %s276
      %p278 = pneg %p194
      %p279 = pneg %p191
      %p280 = scmp.lt.s32.totalorder %s22, 1
      %s281 = scalar_select %p280, %s22, 1
      %s282 = smul.addr %s281, 8
      %s283 = scalar_lea.vmem %s6, %s282
      %s284 = smul.u32 2, %s23
      %p285 = scmp.lt.s32.totalorder %s22, 1
      %s286 = scalar_select %p285, %s22, 1
      %p287 = scmp.lt.s32.totalorder %s284, 1
      %s288 = scalar_select %p287, %s284, 1
      %s289 = smul.addr %s286, 2
      %s290 = sadd.s32 %s288, %s289
      %s291 = smul.addr %s290, 8
      %s292 = scalar_lea.vmem %s0, %s291
      %s293 = smul.u32 2, %s23
      %p294 = scmp.lt.s32.totalorder %s23, 0
      %s295 = scalar_select %p294, %s23, 0
      %s296 = smul.addr %s295, 8
      %s297 = scalar_lea.vmem %s1, %s296
      %p298 = scmp.lt.s32.totalorder %s22, 1
      %s299 = scalar_select %p298, %s22, 1
      %s300 = smul.addr %s299, 8
      %s301 = scalar_lea.vmem %s5, %s300
      %p302 = scmp.lt.s32.totalorder %s22, 1
      %s303 = scalar_select %p302, %s22, 1
      %s304 = smul.addr %s303, 8
      %s305 = scalar_lea.vmem %s6, %s304
      %v306 = vld [vmem:[%s292] sm:$0xff]
      %v307 = vld [vmem:[%s292 + $0x8] sm:$0xff]
      %vm308 = vcmp.ge.f32.partialorder %v306, 0.0
      %vm309 = vcmp.ge.f32.partialorder %v307, 0.0
      %v310 = vmul.f32 %v306, 0.2
      %v311 = vmul.f32 %v307, 0.2
      %v312 = vsel %vm308, %v306, %v310
      %v313 = vsel %vm309, %v307, %v311
      %v314 = vld [vmem:[%s297] sm:$0xff]
      %s315 = scalar_lea.vmem %s297, 8
      %v316 = vld [vmem:[%s315] sm:$0xff]
      %319 = vrot.lane.b32.xlu0 %v312, 127
      %v320 = vpop.permute.xlu0 %319
      %321 = vrot.lane.b32.xlu0 %v313, 127
      %v322 = vpop.permute.xlu0 %321
      %vm325 = vcmask 130048
      %v327 = vsel %vm325, %v316, 0
      %329 = vmatpush.msra.mxu0 0.0
      %330 = vmatpush.msra.mxu0 0.0
      %331 = vmatpush.msra.mxu0 0.0
      %332 = vmatpush.msra.mxu0 0.0
      %333 = vmatpush.msra.mxu0 0.0
      %334 = vmatpush.msra.mxu0 0.0
      %335 = vmatpush.msra.mxu0 0.0
      %336 = vmatpush.msra.mxu0 0.0
      %337 = vmatpush.msra.mxu0 0.0
      %338 = vmatpush.msra.mxu0 0.0
      %339 = vmatpush.msra.mxu0 0.0
      %340 = vmatpush.msra.mxu0 0.0
      %341 = vmatpush.msra.mxu0 0.0
      %342 = vmatpush.msra.mxu0 0.0
      %343 = vmatpush.msra.mxu0 %v322
      %344 = vmatpush.msra.mxu0 %v320
      %345 = vmatmul.f32.gmra.mxu0 %v327
      %v346 = vpop.f32.mrf.mxu0
      %v347 = vadd.f32 0.0, %v346
      %348 = vdwg.mxu0
      %v350 = vsel %vm325, %v314, 0
      %352 = vmatpush.msra.mxu0 0.0
      %353 = vmatpush.msra.mxu0 0.0
      %354 = vmatpush.msra.mxu0 0.0
      %355 = vmatpush.msra.mxu0 0.0
      %356 = vmatpush.msra.mxu0 0.0
      %357 = vmatpush.msra.mxu0 0.0
      %358 = vmatpush.msra.mxu0 0.0
      %359 = vmatpush.msra.mxu0 0.0
      %360 = vmatpush.msra.mxu0 0.0
      %361 = vmatpush.msra.mxu0 0.0
      %362 = vmatpush.msra.mxu0 0.0
      %363 = vmatpush.msra.mxu0 0.0
      %364 = vmatpush.msra.mxu0 0.0
      %365 = vmatpush.msra.mxu0 0.0
      %366 = vmatpush.msra.mxu0 %v313
      %367 = vmatpush.msra.mxu0 %v312
      %368 = vmatmul.f32.gmra.mxu0 %v350
      %v369 = vpop.f32.mrf.mxu0
      %v370 = vadd.f32 %v347, %v369
      %371 = vdwg.mxu0
      %s372 = scalar_lea.vmem %s297, 16
      %v373 = vld [vmem:[%s372] sm:$0xff]
      %374 = vrot.lane.b32.xlu0 %v312, 119
      %v375 = vpop.permute.xlu0 %374
      %376 = vrot.lane.b32.xlu0 %v313, 119
      %v377 = vpop.permute.xlu0 %376
      %v381 = vsel %vm325, %v373, 0
      %383 = vmatpush.msra.mxu0 0.0
      %384 = vmatpush.msra.mxu0 0.0
      %385 = vmatpush.msra.mxu0 0.0
      %386 = vmatpush.msra.mxu0 0.0
      %387 = vmatpush.msra.mxu0 0.0
      %388 = vmatpush.msra.mxu0 0.0
      %389 = vmatpush.msra.mxu0 0.0
      %390 = vmatpush.msra.mxu0 0.0
      %391 = vmatpush.msra.mxu0 0.0
      %392 = vmatpush.msra.mxu0 0.0
      %393 = vmatpush.msra.mxu0 0.0
      %394 = vmatpush.msra.mxu0 0.0
      %395 = vmatpush.msra.mxu0 0.0
      %396 = vmatpush.msra.mxu0 0.0
      %397 = vmatpush.msra.mxu0 %v377
      %398 = vmatpush.msra.mxu0 %v375
      %399 = vmatmul.f32.gmra.mxu0 %v381
      %v400 = vpop.f32.mrf.mxu0
      %v401 = vadd.f32 0.0, %v400
      %402 = vdwg.mxu0
      %v403 = vadd.f32 %v370, %v401
      %s404 = scalar_lea.vmem %s297, 24
      %v405 = vld [vmem:[%s404] sm:$0xff]
      %406 = vrot.lane.b32.xlu0 %v312, 118
      %v407 = vpop.permute.xlu0 %406
      %408 = vrot.lane.b32.xlu0 %v313, 118
      %v409 = vpop.permute.xlu0 %408
      %v413 = vsel %vm325, %v405, 0
      %415 = vmatpush.msra.mxu0 0.0
      %416 = vmatpush.msra.mxu0 0.0
      %417 = vmatpush.msra.mxu0 0.0
      %418 = vmatpush.msra.mxu0 0.0
      %419 = vmatpush.msra.mxu0 0.0
      %420 = vmatpush.msra.mxu0 0.0
      %421 = vmatpush.msra.mxu0 0.0
      %422 = vmatpush.msra.mxu0 0.0
      %423 = vmatpush.msra.mxu0 0.0
      %424 = vmatpush.msra.mxu0 0.0
      %425 = vmatpush.msra.mxu0 0.0
      %426 = vmatpush.msra.mxu0 0.0
      %427 = vmatpush.msra.mxu0 0.0
      %428 = vmatpush.msra.mxu0 0.0
      %429 = vmatpush.msra.mxu0 %v409
      %430 = vmatpush.msra.mxu0 %v407
      %431 = vmatmul.f32.gmra.mxu0 %v413
      %v432 = vpop.f32.mrf.mxu0
      %v433 = vadd.f32 0.0, %v432
      %434 = vdwg.mxu0
      %v435 = vadd.f32 %v403, %v433
      %p436 = scmp.eq.s32.totalorder %s23, 0
      // Predicated region
      $region41: #{conv_block_forward.1} parent=39 // pred_check
        %p437 = pneg %p436
      $region42: #{conv_block_forward.1} parent=39 // pred_check_branch
        %439 = sbr.rel (%p437) target = $region44
      $region43: #{conv_block_forward.1} parent=39 // pred_region
        %vm440 = vcmask 580608
        %441 = vst.msk [vmem:[#allocation2] sm:$0xff] %vm440, %v435
      $region44: #{conv_block_forward.1} parent=39 // pred_fallthru
        _
      %p442 = scmp.gt.s32.totalorder %s23, 0
      // Predicated region
      $region45: #{conv_block_forward.1} parent=39 // pred_check
        %p443 = pneg %p442
      $region46: #{conv_block_forward.1} parent=39 // pred_check_branch
        %445 = sbr.rel (%p443) target = $region48
      $region47: #{conv_block_forward.1} parent=39 // pred_region
        %v446 = vld [vmem:[#allocation2] sm:$0xff]
        %v447 = vadd.f32 %v446, %v435
        %vm448 = vcmask 580608
        %449 = vst.msk [vmem:[#allocation2] sm:$0xff] %vm448, %v447
      $region48: #{conv_block_forward.1} parent=39 // pred_fallthru
        _
      // Predicated region
      $region49: #{conv_block_forward.1} parent=39 // pred_check
        %p450 = pneg %p436
      $region50: #{conv_block_forward.1} parent=39 // pred_check_branch
        %452 = sbr.rel (%p450) target = $region52
      $region51: #{conv_block_forward.1} parent=39 // pred_region
        %v453 = vld [vmem:[#allocation2] sm:$0xff]
        %vm454 = vcmask 64512
        %455 = vst.msk [vmem:[%s301] sm:$0xff] %vm454, %v453
        %v456 = vld [vmem:[#allocation2] sm:$0xff]
        %458 = vrot.lane.b32.xlu0 %v456, 127
        %v459 = vpop.permute.xlu0 %458
        %vm461 = vcmask 130112
        %462 = vst.msk [vmem:[%s301] sm:$0xff] %vm461, %v459
        %v463 = vld [vmem:[#allocation2] sm:$0xff]
        %465 = vrot.lane.b32.xlu0 %v463, 126
        %v466 = vpop.permute.xlu0 %465
        %vm468 = vcmask 195712
        %469 = vst.msk [vmem:[%s301] sm:$0xff] %vm468, %v466
        %v470 = vld [vmem:[#allocation2] sm:$0xff]
        %472 = vrot.lane.b32.xlu0 %v470, 125
        %v473 = vpop.permute.xlu0 %472
        %vm475 = vcmask 261312
        %476 = vst.msk [vmem:[%s301] sm:$0xff] %vm475, %v473
        %v477 = vld [vmem:[#allocation2] sm:$0xff]
        %479 = vrot.lane.b32.xlu0 %v477, 124
        %v480 = vpop.permute.xlu0 %479
        %vm482 = vcmask 326912
        %483 = vst.msk [vmem:[%s301] sm:$0xff] %vm482, %v480
        %v484 = vld [vmem:[#allocation2] sm:$0xff]
        %486 = vrot.lane.b32.xlu0 %v484, 123
        %v487 = vpop.permute.xlu0 %486
        %vm489 = vcmask 392512
        %490 = vst.msk [vmem:[%s301] sm:$0xff] %vm489, %v487
        %v491 = vld [vmem:[#allocation2] sm:$0xff]
        %493 = vrot.lane.b32.xlu0 %v491, 122
        %v494 = vpop.permute.xlu0 %493
        %vm496 = vcmask 458112
        %497 = vst.msk [vmem:[%s301] sm:$0xff] %vm496, %v494
        %v498 = vld [vmem:[#allocation2] sm:$0xff]
        %500 = vrot.lane.b32.xlu0 %v498, 121
        %v501 = vpop.permute.xlu0 %500
        %vm503 = vcmask 523712
        %504 = vst.msk [vmem:[%s301] sm:$0xff] %vm503, %v501
        %v505 = vld [vmem:[%s301] sm:$0xff]
        %vm506 = vcmask 523264
        %v507 = vsel %vm506, %v505, 0.0
        %508 = vadd.xlane.f32.xlu0 %v507
        %v509 = vpop.xlane.xlu0 %508
        %v510 = vmul.f32 %v509, 0.015625
        %v511 = vsub.f32 %v505, %v510
        %v512 = vmul.f32 %v511, %v511
        %v513 = vsel %vm506, %v512, 0.0
        %514 = vadd.xlane.f32.xlu0 %v513
        %v515 = vpop.xlane.xlu0 %514
        %v516 = vmul.f32 %v515, 0.015625
        %v517 = vadd.f32 %v516, 1e-05
        %v518 = vrsqrt.pop %v517
        %v519 = vmul.f32 %v518, %v517
        %v520 = vmul.f32 %v519, %v518
        %v521 = vmul.f32 0.5, %v520
        %v522 = vsub.f32 1.5, %v521
        %v523 = vmul.f32 %v518, %v522
        %vm524 = vweird.f32 %v517
        %vm525 = vweird.f32 %v518
        %vm526 = vmor %vm524, %vm525
        %v527 = vsel %vm526, %v518, %v523
        %v528 = vld [vmem:[%s3] sm:$0xff]
        %v529 = vmul.f32 %v527, %v528
        %531 = vset.pattern.permute.xlu0 0
        %532 = vperm.xlu0 %531, %v529
        %v533 = vpop.permute.xlu0 %532
        %v535 = vmul.f32 %v511, %v533
        %v536 = vld [vmem:[%s4] sm:$0xff]
        %538 = vset.pattern.permute.xlu0 0
        %539 = vperm.xlu0 %538, %v536
        %v540 = vpop.permute.xlu0 %539
        %v542 = vadd.f32 %v535, %v540
        %543 = vst.msk [vmem:[%s301] sm:$0xff] %vm506, %v542
        %v544 = vld [vmem:[%s2] sm:$0xff]
        %v545 = vadd.f32 %v510, %v544
        %vm546 = vcmask 7168
        %547 = vst.msk [vmem:[%s305] sm:$0xff] %vm546, %v545
      $region52: #{conv_block_forward.1} parent=39 // pred_fallthru
        _
      %p548 = scmp.lt.s32.totalorder %s22, 1
      %s549 = scalar_select %p548, %s22, 1
      %s550 = smul.addr %s549, 8
      %s551 = scalar_lea.vmem %s5, %s550
      %p552 = scmp.lt.s32.totalorder %s22, 1
      %s553 = scalar_select %p552, %s22, 1
      %s554 = smul.addr %s553, 8
      %s555 = scalar_lea.vmem %s6, %s554
      // Predicated region
      $region53: #{conv_block_forward.1} parent=39 // pred_check
        %p556 = pneg %p165
      $region54: #{conv_block_forward.1} parent=39 // pred_check_branch
        %558 = sbr.rel (%p556) target = $region56
      $region55: #{conv_block_forward.1} parent=39 // pred_region
        _
      $region56: #{conv_block_forward.1} parent=39 // pred_fallthru
        _
      // Predicated region
      $region57: #{conv_block_forward.1} parent=39 // pred_check
        %p559 = pneg %p191
      $region58: #{conv_block_forward.1} parent=39 // pred_check_branch
        %561 = sbr.rel (%p559) target = $region60
      $region59: #{conv_block_forward.1} parent=39 // pred_region
        _
      $region60: #{conv_block_forward.1} parent=39 // pred_fallthru
        _
    $region40: #{conv_block_forward.1} parent=5 // pred_fallthru
      _
    %p562 = scmp.le.s32.totalorder 2, %s13
    // Predicated region
    $region61: #{conv_block_forward.1} parent=5 // pred_check
      %p563 = pneg %p562
    $region62: #{conv_block_forward.1} parent=5 // pred_check_branch
      %565 = sbr.rel (%p563) target = $region64
    $region63: #{conv_block_forward.1} parent=5 // pred_region
      %s566 = ssub.s32 %s13, 2
      // Predicated region
      $region65: #{conv_block_forward.1} parent=63 // pred_check
        %p567 = pneg %p171
      $region66: #{conv_block_forward.1} parent=63 // pred_check_branch
        %569 = sbr.rel (%p567) target = $region68
      $region67: #{conv_block_forward.1} parent=63 // pred_region
        %p570 = scmp.lt.s32.totalorder %s24, 1
        %s571 = scalar_select %p570, %s24, 1
        %s572 = smul.addr %s571, 8
        %s573 = scalar_lea.vmem %s5, %s572
      $region68: #{conv_block_forward.1} parent=63 // pred_fallthru
        _
      // Predicated region
      $region69: #{conv_block_forward.1} parent=63 // pred_check
        %p574 = pneg %p197
      $region70: #{conv_block_forward.1} parent=63 // pred_check_branch
        %576 = sbr.rel (%p574) target = $region72
      $region71: #{conv_block_forward.1} parent=63 // pred_region
        %p577 = scmp.lt.s32.totalorder %s24, 1
        %s578 = scalar_select %p577, %s24, 1
        %s579 = smul.addr %s578, 8
        %s580 = scalar_lea.vmem %s6, %s579
      $region72: #{conv_block_forward.1} parent=63 // pred_fallthru
        _
    $region64: #{conv_block_forward.1} parent=5 // pred_fallthru
      _
  $region6: #{conv_block_forward.1} parent=0 // loop_footer
    %s17 = sadd.s32 1, %s13
  $region7: #{conv_block_forward.1} parent=0 // loop_footer_branch
    %12 = sbr.rel target = $region3
  $region8: #{conv_block_forward.1} parent=0 // loop_exit
    _

</llo_original>
